<compile_context>
chip_gen: v6e
topology: v6e:2x2x1
jax: 0.10.0
libtpu: 0.0.40
codegen_flags: <defaults>
</compile_context>

<pallas_src>
import jax
import jax.numpy as jnp
from jax import lax
from jax.experimental import pallas as pl
from jax.experimental.pallas import tpu as pltpu


# Packed-parameter layout: (32, size) f32.
#   mult half = rows [0:16):  rows 0-5  = W_mult,  row 9  = b_mult
#   norm half = rows [16:32): rows 22-24 = W_norm, row 25 = b_norm
# Augmented-x columns (16): 0-5 = spatial[:,0:6], 6-8 = spatial[:,6:9], 9 = 1.0, rest 0.
_HALF = 16
_BIAS_COL = 9


def _simple_spatial_kernel(xt_ref, p_ref, o_ref):
    xt = xt_ref[...]                                  # (16, TB) f32, batch on lanes
    # Contract the 16-dim (lhs dim 0) against the param rows -> (TB, size).
    dn = (((0,), (0,)), ((), ()))
    y_m = lax.dot_general(xt, p_ref[0:_HALF, :], dn,
                          preferred_element_type=jnp.float32)
    y_n = lax.dot_general(xt, p_ref[_HALF:2 * _HALF, :], dn,
                          preferred_element_type=jnp.float32)
    o_ref[...] = (y_m * y_n).astype(o_ref.dtype)      # single VPU multiply


def _round_up(n, m):
    return pl.cdiv(n, m) * m


def _pack_params(w_mult, b_mult, w_norm, b_norm, size):
    p = jnp.zeros((2 * _HALF, size), jnp.float32)
    p = p.at[0:6, :].set(w_mult.astype(jnp.float32))
    p = p.at[_BIAS_COL, :].set(b_mult.reshape(-1).astype(jnp.float32))
    p = p.at[_HALF + 6:_HALF + 9, :].set(w_norm.astype(jnp.float32))
    p = p.at[_HALF + _BIAS_COL, :].set(b_norm.reshape(-1).astype(jnp.float32))
    return p


def _choose_batch_tile(b0, size, block_b):
    """Pick the batch tile (multiple of 128) from a VMEM budget."""
    row_bytes = 4 * _round_up(size, 128)          # one output batch-row in VMEM
    xcol_bytes = 4 * _HALF                        # one batch-column of transposed x
    budget = 12 * 1024 * 1024                     # double-buffered in+out working set
    tb_mem = budget // (2 * (row_bytes + xcol_bytes))
    tb = min(block_b, b0, max(128, tb_mem))
    tb = max(128, (tb // 128) * 128)
    # Keep >= 2 grid steps when the batch allows it (v7x: both TensorCores busy).
    if b0 >= 256 and tb >= b0:
        tb = _round_up(pl.cdiv(b0, 2), 128)
    return tb


def simple_spatial_input(spatial, w_mult, b_mult, w_norm, b_norm,
                         *, block_b=4096, out_dtype=jnp.float32):
    """spatial: (B, 9). w_mult: (6, size). w_norm: (3, size). biases: (size,) or (1, size).

    out_dtype can be set to jnp.bfloat16 to halve HBM write traffic if the consumer
    tolerates it (compute/accumulation stays f32).
    """
    B, F = spatial.shape
    assert F == 9, f"expected 9 spatial features, got {F}"
    size = w_mult.shape[1]
    assert w_mult.shape == (6, size) and w_norm.shape == (3, size)

    params = _pack_params(w_mult, b_mult, w_norm, b_norm, size)

    # Batch padding / tiling (tb multiple of 128: it is the lane dim of the x block).
    b0 = _round_up(B, 128)
    tb = _choose_batch_tile(b0, size, block_b)
    b_pad = _round_up(b0, tb)

    # Augmented, transposed, lane-dense input: (16, b_pad).
    xt = jnp.zeros((_HALF, b_pad), jnp.float32)
    xt = xt.at[0:9, :B].set(spatial.astype(jnp.float32).T)
    xt = xt.at[_BIAS_COL, :].set(1.0)

    grid = (b_pad // tb,)
    out = pl.pallas_call(
        _simple_spatial_kernel,
        out_shape=jax.ShapeDtypeStruct((b_pad, size), out_dtype),
        grid=grid,
        in_specs=[
            pl.BlockSpec((_HALF, tb), lambda i: (0, i)),        # batch-tiled, lane-dense
            pl.BlockSpec((2 * _HALF, size), lambda i: (0, 0)),  # VMEM-resident params
        ],
        out_specs=pl.BlockSpec((tb, size), lambda i: (i, 0)),   # last dim == size (no 4x pad)
        compiler_params=pltpu.CompilerParams(
            dimension_semantics=("parallel",),   # shard batch across TensorCores
            vmem_limit_bytes=32 * 1024 * 1024,   # explicit budget, safe on v5e/v6e/v7x
        ),
    )(xt, params)

    return out[:B] if b_pad != B else out


def reference(spatial, w_mult, b_mult, w_norm, b_norm):
    pm = spatial[:, 0:6] @ w_mult + b_mult.reshape(1, -1)
    pn = spatial[:, 6:9] @ w_norm + b_norm.reshape(1, -1)
    return pm * pn


if __name__ == "__main__":
    key = jax.random.PRNGKey(0)
    k_x, k_wm, k_bm, k_wn, k_bn = jax.random.split(key, 5)

    B = 12        # small batch (exercises batch padding: 12 -> 128)
    size = 32     # module's `size` argument (exercises masked narrow-output stores)

    spatial = jax.random.normal(k_x, (B, 9), dtype=jnp.float32)

    # Synthetic nn.Linear(6, size) / nn.Linear(3, size) parameters,
    # stored pre-transposed as (in_features, size).
    w_mult = jax.random.normal(k_wm, (6, size), dtype=jnp.float32) * 0.1
    b_mult = jax.random.normal(k_bm, (size,), dtype=jnp.float32) * 0.1
    w_norm = jax.random.normal(k_wn, (3, size), dtype=jnp.float32) * 0.1
    b_norm = jax.random.normal(k_bn, (size,), dtype=jnp.float32) * 0.1

    out = simple_spatial_input(spatial, w_mult, b_mult, w_norm, b_norm)
    out = jax.block_until_ready(out)
    ref = reference(spatial, w_mult, b_mult, w_norm, b_norm)
    assert out.shape == (B, size)
    assert jnp.allclose(out, ref, atol=1e-5, rtol=1e-5), "mismatch vs reference (small B)"

    # Second check: larger batch that exercises the multi-step grid path
    # (B=1040 -> b0=1152 -> tb=640, b_pad=1280, grid=(2,)).
    B2 = 1040
    spatial2 = jax.random.normal(jax.random.PRNGKey(1), (B2, 9), dtype=jnp.float32)
    out2 = jax.block_until_ready(
        simple_spatial_input(spatial2, w_mult, b_mult, w_norm, b_norm))
    ref2 = reference(spatial2, w_mult, b_mult, w_norm, b_norm)
    assert out2.shape == (B2, size)
    assert jnp.allclose(out2, ref2, atol=1e-5, rtol=1e-5), "mismatch vs reference (grid B)"

    print("KERNEL_OK")
</pallas_src>

<mosaic_0001>
module attributes {stable_mosaic.version = 11 : i64} {
  func.func @_simple_spatial_kernel(%arg0: i32, %arg1: memref<16x128xf32, #tpu.memory_space<vmem>>, %arg2: memref<32x32xf32, #tpu.memory_space<vmem>>, %arg3: memref<128x32xf32, #tpu.memory_space<vmem>>) attributes {dimension_semantics = [#tpu.dimension_semantics<parallel>], iteration_bounds = array<i64: 1>, scalar_prefetch = 0 : i64, scratch_operands = 0 : i64, tpu.core_type = #tpu.core_type<tc>, window_params = [{transform_indices = @transform_0, window_bounds = array<i64: 16, 128>}, {pipeline_mode = #tpu.pipeline_mode<synchronous>, transform_indices = @transform_1, window_bounds = array<i64: 32, 32>}, {transform_indices = @transform_2, window_bounds = array<i64: 128, 32>}]} {
    %c0 = arith.constant 0 : index
    %c0_0 = arith.constant 0 : index
    %0 = vector.load %arg1[%c0, %c0_0] : memref<16x128xf32, #tpu.memory_space<vmem>>, vector<16x128xf32>
    %c0_1 = arith.constant 0 : index
    %c0_2 = arith.constant 0 : index
    %1 = vector.load %arg2[%c0_1, %c0_2] : memref<32x32xf32, #tpu.memory_space<vmem>>, vector<16x32xf32>
    %cst = arith.constant dense<0.000000e+00> : vector<128x32xf32>
    %2 = tpu.matmul %0, %1, %cst {dimension_numbers = #tpu.dot_dimension_numbers<[0], [0], [1], [1], [0, 1, 1, 1], [], []>} : vector<16x128xf32>, vector<16x32xf32>, vector<128x32xf32> -> vector<128x32xf32>
    %c16 = arith.constant 16 : index
    %c0_3 = arith.constant 0 : index
    %3 = vector.load %arg2[%c16, %c0_3] : memref<32x32xf32, #tpu.memory_space<vmem>>, vector<16x32xf32>
    %cst_4 = arith.constant dense<0.000000e+00> : vector<128x32xf32>
    %4 = tpu.matmul %0, %3, %cst_4 {dimension_numbers = #tpu.dot_dimension_numbers<[0], [0], [1], [1], [0, 1, 1, 1], [], []>} : vector<16x128xf32>, vector<16x32xf32>, vector<128x32xf32> -> vector<128x32xf32>
    %5 = arith.mulf %2, %4 : vector<128x32xf32>
    %c0_5 = arith.constant 0 : index
    %c0_6 = arith.constant 0 : index
    %6 = vector.load %arg3[%c0_5, %c0_6] : memref<128x32xf32, #tpu.memory_space<vmem>>, vector<128x32xf32>
    tpu.vector_store %arg3[%c0_5, %c0_6], %5 {strides = array<i32>} : memref<128x32xf32, #tpu.memory_space<vmem>>, vector<128x32xf32>,
    return
  }
  func.func @transform_0(%arg0: i32) -> (i32, i32) {
    %c0_i32 = arith.constant 0 : i32
    %c0_i32_0 = arith.constant 0 : i32
    return %c0_i32, %arg0 : i32, i32
  }
  func.func @transform_1(%arg0: i32) -> (i32, i32) {
    %c0_i32 = arith.constant 0 : i32
    %c0_i32_0 = arith.constant 0 : i32
    %c0_i32_1 = arith.constant 0 : i32
    return %c0_i32, %c0_i32_0 : i32, i32
  }
  func.func @transform_2(%arg0: i32) -> (i32, i32) {
    %c0_i32 = arith.constant 0 : i32
    %c0_i32_0 = arith.constant 0 : i32
    return %arg0, %c0_i32 : i32, i32
  }
}

</mosaic_0001>

<llo_original>
// kernel: tpu_custom_call.1
$region0: #{tpu_custom_call.1}
  #allocation0 [shape = 'u32[]', space=smem, size = 0x4, offset = 0x4, fixed_abs, tag = 'smem constant byte address 0x4 - core index']
  #allocation1 [shape = 'u32[144,128]{1,0:T(1,128)}', space=vmem, size = 0x12000, scoped, tag = 'internal scratch']
  %s0 = inlined_call_operand.hbm [shape: f32[16,128], index: 0, kind: input, shape index: {}]
  %s1 = inlined_call_operand.hbm [shape: f32[32,32], index: 1, kind: input, shape index: {}]
  %s2 = inlined_call_operand.vmem [shape: f32[128,32], index: 2, kind: output, shape index: {}]
  %s3 = sld [smem:[#allocation0]]
  $region26: #{tpu_custom_call.1} parent=0
    _
  %s5 = ssub.s32 1, %s3
  %s6 = scalar_select 0, %s5, %s3
  $region1: #{tpu_custom_call.1} parent=0
    #allocation2 [shape = 'u8[8192]{0}', space=vmem, size = 0x2000, scoped, tag = 'input window, operand 0, single buffered']
    #allocation3 [shape = 's32[1]{0}', space=sflag, size = 0x4, scoped, tag = 'scoped memory for tpu_custom_call.1']
    #allocation4 [shape = 'u8[16384]{0}', space=vmem, size = 0x4000, scoped, tag = 'input window, operand 1, single buffered']
    #allocation5 [shape = 's32[1]{0}', space=sflag, size = 0x4, scoped, tag = 'scoped memory for tpu_custom_call.1']
    %7 = vsyncpa [#allocation3], 0
    %8 = vsyncpa [#allocation5], 0
    // Predicated region
    $region2: #{tpu_custom_call.1} parent=1 // pred_check
      _
    $region3: #{tpu_custom_call.1} parent=1 // pred_check_branch
      %10 = sbr.rel (0) target = $region5
    $region4: #{tpu_custom_call.1} parent=1 // pred_region
      %s12 = ssub.s32 256, 256
      %13 = vsyncadd [#allocation3], %s12
      %s14 = sshll.u32 [#allocation2], 4
      %s15 = int_to_ptr.vmem [resolvable:$true] %s14
      %20 = dma.hbm_to_vmem [thread:$0]  %s0, 256, %s15, [#allocation3], 128, 128, 8
    $region5: #{tpu_custom_call.1} parent=1 // pred_fallthru
      _
    // Predicated region
    $region6: #{tpu_custom_call.1} parent=1 // pred_check
      _
    $region7: #{tpu_custom_call.1} parent=1 // pred_check_branch
      %22 = sbr.rel (0) target = $region9
    $region8: #{tpu_custom_call.1} parent=1 // pred_region
      %s24 = ssub.s32 512, 512
      %25 = vsyncadd [#allocation5], %s24
      %s26 = sshll.u32 [#allocation4], 4
      %s27 = int_to_ptr.vmem [resolvable:$true] %s26
      %32 = dma.hbm_to_vmem [thread:$0]  %s1, 512, %s27, [#allocation5], 128, 128, 8
    $region9: #{tpu_custom_call.1} parent=1 // pred_fallthru
      _
    // Predicated region
    $region10: #{tpu_custom_call.1} parent=1 // pred_check
      _
    $region11: #{tpu_custom_call.1} parent=1 // pred_check_branch
      %34 = sbr.rel (0) target = $region13
    $region12: #{tpu_custom_call.1} parent=1 // pred_region
      %35 = dma.done [#allocation3], 256
    $region13: #{tpu_custom_call.1} parent=1 // pred_fallthru
      _
    // Predicated region
    $region14: #{tpu_custom_call.1} parent=1 // pred_check
      _
    $region15: #{tpu_custom_call.1} parent=1 // pred_check_branch
      %37 = sbr.rel (0) target = $region17
    $region16: #{tpu_custom_call.1} parent=1 // pred_region
      %38 = dma.done [#allocation5], 512
    $region17: #{tpu_custom_call.1} parent=1 // pred_fallthru
      _
    %v39 = vld [vmem:[#allocation2] sm:$0xff]
    %v40 = vld [vmem:[#allocation2 + $0x8] sm:$0xff]
    %v41 = vld [vmem:[#allocation4] sm:$0xff]
    %v42 = vld [vmem:[#allocation4 + $0x8] sm:$0xff]
    %43 = vxpose.xlu0.b32.start [1/16] %v39, 128
    %44 = vxpose.xlu0.b32.cont [2/16] %v40, 128
    %45 = vxpose.xlu0.b32.cont [3/16] 0.0, 128
    %46 = vxpose.xlu0.b32.cont [4/16] 0.0, 128
    %47 = vxpose.xlu0.b32.cont [5/16] 0.0, 128
    %48 = vxpose.xlu0.b32.cont [6/16] 0.0, 128
    %49 = vxpose.xlu0.b32.cont [7/16] 0.0, 128
    %50 = vxpose.xlu0.b32.cont [8/16] 0.0, 128
    %51 = vxpose.xlu0.b32.cont [9/16] 0.0, 128
    %52 = vxpose.xlu0.b32.cont [10/16] 0.0, 128
    %53 = vxpose.xlu0.b32.cont [11/16] 0.0, 128
    %54 = vxpose.xlu0.b32.cont [12/16] 0.0, 128
    %55 = vxpose.xlu0.b32.cont [13/16] 0.0, 128
    %56 = vxpose.xlu0.b32.cont [14/16] 0.0, 128
    %57 = vxpose.xlu0.b32.cont [15/16] 0.0, 128
    %58 = vxpose.xlu0.b32.end [16/16] 0.0, 128
    %v59 = vpop.trf.xlu0
    %v60 = vpop.trf.xlu0
    %v61 = vpop.trf.xlu0
    %v62 = vpop.trf.xlu0
    %v63 = vpop.trf.xlu0
    %v64 = vpop.trf.xlu0
    %v65 = vpop.trf.xlu0
    %v66 = vpop.trf.xlu0
    %v67 = vpop.trf.xlu0
    %v68 = vpop.trf.xlu0
    %v69 = vpop.trf.xlu0
    %v70 = vpop.trf.xlu0
    %v71 = vpop.trf.xlu0
    %v72 = vpop.trf.xlu0
    %v73 = vpop.trf.xlu0
    %v74 = vpop.trf.xlu0
    %vm75 = vcmask 130048
    %v77 = vsel %vm75, %v59, 0
    %v80 = vsel %vm75, %v60, 0
    %v83 = vsel %vm75, %v61, 0
    %v86 = vsel %vm75, %v62, 0
    %v89 = vsel %vm75, %v63, 0
    %v92 = vsel %vm75, %v64, 0
    %v95 = vsel %vm75, %v65, 0
    %v98 = vsel %vm75, %v66, 0
    %v101 = vsel %vm75, %v67, 0
    %v104 = vsel %vm75, %v68, 0
    %v107 = vsel %vm75, %v69, 0
    %v110 = vsel %vm75, %v70, 0
    %v113 = vsel %vm75, %v71, 0
    %v116 = vsel %vm75, %v72, 0
    %v119 = vsel %vm75, %v73, 0
    %v122 = vsel %vm75, %v74, 0
    %124 = vmatprep.subr.mxu0 0.0
    %125 = vmatpush1.msra.mxu0 0.0
    %126 = vmatprep.subr.mxu0 0.0
    %127 = vmatpush1.msra.mxu0 0.0
    %128 = vmatprep.subr.mxu0 0.0
    %129 = vmatpush1.msra.mxu0 0.0
    %130 = vmatprep.subr.mxu0 0.0
    %131 = vmatpush1.msra.mxu0 0.0
    %132 = vmatprep.subr.mxu0 0.0
    %133 = vmatpush1.msra.mxu0 0.0
    %134 = vmatprep.subr.mxu0 0.0
    %135 = vmatpush1.msra.mxu0 0.0
    %136 = vmatprep.subr.mxu0 0.0
    %137 = vmatpush1.msra.mxu0 0.0
    %138 = vmatprep.subr.mxu0 0.0
    %139 = vmatpush1.msra.mxu0 0.0
    %140 = vmatprep.subr.mxu0 0.0
    %141 = vmatpush1.msra.mxu0 0.0
    %142 = vmatprep.subr.mxu0 0.0
    %143 = vmatpush1.msra.mxu0 0.0
    %144 = vmatprep.subr.mxu0 0.0
    %145 = vmatpush1.msra.mxu0 0.0
    %146 = vmatprep.subr.mxu0 0.0
    %147 = vmatpush1.msra.mxu0 0.0
    %148 = vmatprep.subr.mxu0 0.0
    %149 = vmatpush1.msra.mxu0 0.0
    %150 = vmatprep.subr.mxu0 0.0
    %151 = vmatpush1.msra.mxu0 0.0
    %152 = vmatprep.subr.mxu0 0.0
    %153 = vmatpush1.msra.mxu0 %v42
    %154 = vmatprep.subr.mxu0 0.0
    %155 = vmatpush1.msra.mxu0 %v41
    %156 = vmatprep.subr.mxu0 0.0
    %157 = vmatpush2.msra.mxu0 0.0
    %158 = vmatprep.subr.mxu0 0.0
    %159 = vmatpush2.msra.mxu0 0.0
    %160 = vmatprep.subr.mxu0 0.0
    %161 = vmatpush2.msra.mxu0 0.0
    %162 = vmatprep.subr.mxu0 0.0
    %163 = vmatpush2.msra.mxu0 0.0
    %164 = vmatprep.subr.mxu0 0.0
    %165 = vmatpush2.msra.mxu0 0.0
    %166 = vmatprep.subr.mxu0 0.0
    %167 = vmatpush2.msra.mxu0 0.0
    %168 = vmatprep.subr.mxu0 0.0
    %169 = vmatpush2.msra.mxu0 0.0
    %170 = vmatprep.subr.mxu0 0.0
    %171 = vmatpush2.msra.mxu0 0.0
    %172 = vmatprep.subr.mxu0 0.0
    %173 = vmatpush2.msra.mxu0 0.0
    %174 = vmatprep.subr.mxu0 0.0
    %175 = vmatpush2.msra.mxu0 0.0
    %176 = vmatprep.subr.mxu0 0.0
    %177 = vmatpush2.msra.mxu0 0.0
    %178 = vmatprep.subr.mxu0 0.0
    %179 = vmatpush2.msra.mxu0 0.0
    %180 = vmatprep.subr.mxu0 0.0
    %181 = vmatpush2.msra.mxu0 0.0
    %182 = vmatprep.subr.mxu0 0.0
    %183 = vmatpush2.msra.mxu0 0.0
    %184 = vmatprep.subr.mxu0 0.0
    %185 = vmatpush2.msra.mxu0 0.0
    %186 = vmatprep.subr.mxu0 0.0
    %187 = vmatpush2.msra.mxu0 0.0
    %188 = vmatprep.mubr.f32.mxu0 0.0
    %189 = vmatmul.mubr.f32.gmra.mxu0 %v77
    %v190 = vpop.f32.mrf.mxu0
    %v191 = vadd.f32 0.0, %v190
    %v192 = vpop.f32.mrf.mxu0
    %193 = vmatprep.mubr.f32.mxu0 0.0
    %194 = vmatmul.mubr.f32.gmra.mxu0 %v80
    %v195 = vpop.f32.mrf.mxu0
    %v196 = vadd.f32 0.0, %v195
    %v197 = vpop.f32.mrf.mxu0
    %198 = vmatprep.mubr.f32.mxu0 0.0
    %199 = vmatmul.mubr.f32.gmra.mxu0 %v83
    %v200 = vpop.f32.mrf.mxu0
    %v201 = vadd.f32 0.0, %v200
    %v202 = vpop.f32.mrf.mxu0
    %203 = vmatprep.mubr.f32.mxu0 0.0
    %204 = vmatmul.mubr.f32.gmra.mxu0 %v86
    %v205 = vpop.f32.mrf.mxu0
    %v206 = vadd.f32 0.0, %v205
    %v207 = vpop.f32.mrf.mxu0
    %208 = vmatprep.mubr.f32.mxu0 0.0
    %209 = vmatmul.mubr.f32.gmra.mxu0 %v89
    %v210 = vpop.f32.mrf.mxu0
    %v211 = vadd.f32 0.0, %v210
    %v212 = vpop.f32.mrf.mxu0
    %213 = vmatprep.mubr.f32.mxu0 0.0
    %214 = vmatmul.mubr.f32.gmra.mxu0 %v92
    %v215 = vpop.f32.mrf.mxu0
    %v216 = vadd.f32 0.0, %v215
    %v217 = vpop.f32.mrf.mxu0
    %218 = vmatprep.mubr.f32.mxu0 0.0
    %219 = vmatmul.mubr.f32.gmra.mxu0 %v95
    %v220 = vpop.f32.mrf.mxu0
    %v221 = vadd.f32 0.0, %v220
    %v222 = vpop.f32.mrf.mxu0
    %223 = vmatprep.mubr.f32.mxu0 0.0
    %224 = vmatmul.mubr.f32.gmra.mxu0 %v98
    %v225 = vpop.f32.mrf.mxu0
    %v226 = vadd.f32 0.0, %v225
    %v227 = vpop.f32.mrf.mxu0
    %228 = vmatprep.mubr.f32.mxu0 0.0
    %229 = vmatmul.mubr.f32.gmra.mxu0 %v101
    %v230 = vpop.f32.mrf.mxu0
    %v231 = vadd.f32 0.0, %v230
    %v232 = vpop.f32.mrf.mxu0
    %233 = vmatprep.mubr.f32.mxu0 0.0
    %234 = vmatmul.mubr.f32.gmra.mxu0 %v104
    %v235 = vpop.f32.mrf.mxu0
    %v236 = vadd.f32 0.0, %v235
    %v237 = vpop.f32.mrf.mxu0
    %238 = vmatprep.mubr.f32.mxu0 0.0
    %239 = vmatmul.mubr.f32.gmra.mxu0 %v107
    %v240 = vpop.f32.mrf.mxu0
    %v241 = vadd.f32 0.0, %v240
    %v242 = vpop.f32.mrf.mxu0
    %243 = vmatprep.mubr.f32.mxu0 0.0
    %244 = vmatmul.mubr.f32.gmra.mxu0 %v110
    %v245 = vpop.f32.mrf.mxu0
    %v246 = vadd.f32 0.0, %v245
    %v247 = vpop.f32.mrf.mxu0
    %248 = vmatprep.mubr.f32.mxu0 0.0
    %249 = vmatmul.mubr.f32.gmra.mxu0 %v113
    %v250 = vpop.f32.mrf.mxu0
    %v251 = vadd.f32 0.0, %v250
    %v252 = vpop.f32.mrf.mxu0
    %253 = vmatprep.mubr.f32.mxu0 0.0
    %254 = vmatmul.mubr.f32.gmra.mxu0 %v116
    %v255 = vpop.f32.mrf.mxu0
    %v256 = vadd.f32 0.0, %v255
    %v257 = vpop.f32.mrf.mxu0
    %258 = vmatprep.mubr.f32.mxu0 0.0
    %259 = vmatmul.mubr.f32.gmra.mxu0 %v119
    %v260 = vpop.f32.mrf.mxu0
    %v261 = vadd.f32 0.0, %v260
    %v262 = vpop.f32.mrf.mxu0
    %263 = vmatprep.mubr.f32.mxu0 0.0
    %264 = vmatmul.mubr.f32.gmra.mxu0 %v122
    %v265 = vpop.f32.mrf.mxu0
    %v266 = vadd.f32 0.0, %v265
    %v267 = vpop.f32.mrf.mxu0
    %268 = vdwg.mxu0
    %v269 = vld [vmem:[#allocation4 + $0x10] sm:$0xff]
    %v270 = vld [vmem:[#allocation4 + $0x18] sm:$0xff]
    %271 = vmatprep.subr.mxu0 0.0
    %272 = vmatpush1.msra.mxu0 0.0
    %273 = vmatprep.subr.mxu0 0.0
    %274 = vmatpush1.msra.mxu0 0.0
    %275 = vmatprep.subr.mxu0 0.0
    %276 = vmatpush1.msra.mxu0 0.0
    %277 = vmatprep.subr.mxu0 0.0
    %278 = vmatpush1.msra.mxu0 0.0
    %279 = vmatprep.subr.mxu0 0.0
    %280 = vmatpush1.msra.mxu0 0.0
    %281 = vmatprep.subr.mxu0 0.0
    %282 = vmatpush1.msra.mxu0 0.0
    %283 = vmatprep.subr.mxu0 0.0
    %284 = vmatpush1.msra.mxu0 0.0
    %285 = vmatprep.subr.mxu0 0.0
    %286 = vmatpush1.msra.mxu0 0.0
    %287 = vmatprep.subr.mxu0 0.0
    %288 = vmatpush1.msra.mxu0 0.0
    %289 = vmatprep.subr.mxu0 0.0
    %290 = vmatpush1.msra.mxu0 0.0
    %291 = vmatprep.subr.mxu0 0.0
    %292 = vmatpush1.msra.mxu0 0.0
    %293 = vmatprep.subr.mxu0 0.0
    %294 = vmatpush1.msra.mxu0 0.0
    %295 = vmatprep.subr.mxu0 0.0
    %296 = vmatpush1.msra.mxu0 0.0
    %297 = vmatprep.subr.mxu0 0.0
    %298 = vmatpush1.msra.mxu0 0.0
    %299 = vmatprep.subr.mxu0 0.0
    %300 = vmatpush1.msra.mxu0 %v270
    %301 = vmatprep.subr.mxu0 0.0
    %302 = vmatpush1.msra.mxu0 %v269
    %303 = vmatprep.subr.mxu0 0.0
    %304 = vmatpush2.msra.mxu0 0.0
    %305 = vmatprep.subr.mxu0 0.0
    %306 = vmatpush2.msra.mxu0 0.0
    %307 = vmatprep.subr.mxu0 0.0
    %308 = vmatpush2.msra.mxu0 0.0
    %309 = vmatprep.subr.mxu0 0.0
    %310 = vmatpush2.msra.mxu0 0.0
    %311 = vmatprep.subr.mxu0 0.0
    %312 = vmatpush2.msra.mxu0 0.0
    %313 = vmatprep.subr.mxu0 0.0
    %314 = vmatpush2.msra.mxu0 0.0
    %315 = vmatprep.subr.mxu0 0.0
    %316 = vmatpush2.msra.mxu0 0.0
    %317 = vmatprep.subr.mxu0 0.0
    %318 = vmatpush2.msra.mxu0 0.0
    %319 = vmatprep.subr.mxu0 0.0
    %320 = vmatpush2.msra.mxu0 0.0
    %321 = vmatprep.subr.mxu0 0.0
    %322 = vmatpush2.msra.mxu0 0.0
    %323 = vmatprep.subr.mxu0 0.0
    %324 = vmatpush2.msra.mxu0 0.0
    %325 = vmatprep.subr.mxu0 0.0
    %326 = vmatpush2.msra.mxu0 0.0
    %327 = vmatprep.subr.mxu0 0.0
    %328 = vmatpush2.msra.mxu0 0.0
    %329 = vmatprep.subr.mxu0 0.0
    %330 = vmatpush2.msra.mxu0 0.0
    %331 = vmatprep.subr.mxu0 0.0
    %332 = vmatpush2.msra.mxu0 0.0
    %333 = vmatprep.subr.mxu0 0.0
    %334 = vmatpush2.msra.mxu0 0.0
    %335 = vmatprep.mubr.f32.mxu0 0.0
    %336 = vmatmul.mubr.f32.gmra.mxu0 %v77
    %v337 = vpop.f32.mrf.mxu0
    %v338 = vadd.f32 0.0, %v337
    %v339 = vpop.f32.mrf.mxu0
    %340 = vmatprep.mubr.f32.mxu0 0.0
    %341 = vmatmul.mubr.f32.gmra.mxu0 %v80
    %v342 = vpop.f32.mrf.mxu0
    %v343 = vadd.f32 0.0, %v342
    %v344 = vpop.f32.mrf.mxu0
    %345 = vmatprep.mubr.f32.mxu0 0.0
    %346 = vmatmul.mubr.f32.gmra.mxu0 %v83
    %v347 = vpop.f32.mrf.mxu0
    %v348 = vadd.f32 0.0, %v347
    %v349 = vpop.f32.mrf.mxu0
    %350 = vmatprep.mubr.f32.mxu0 0.0
    %351 = vmatmul.mubr.f32.gmra.mxu0 %v86
    %v352 = vpop.f32.mrf.mxu0
    %v353 = vadd.f32 0.0, %v352
    %v354 = vpop.f32.mrf.mxu0
    %355 = vmatprep.mubr.f32.mxu0 0.0
    %356 = vmatmul.mubr.f32.gmra.mxu0 %v89
    %v357 = vpop.f32.mrf.mxu0
    %v358 = vadd.f32 0.0, %v357
    %v359 = vpop.f32.mrf.mxu0
    %360 = vmatprep.mubr.f32.mxu0 0.0
    %361 = vmatmul.mubr.f32.gmra.mxu0 %v92
    %v362 = vpop.f32.mrf.mxu0
    %v363 = vadd.f32 0.0, %v362
    %v364 = vpop.f32.mrf.mxu0
    %365 = vmatprep.mubr.f32.mxu0 0.0
    %366 = vmatmul.mubr.f32.gmra.mxu0 %v95
    %v367 = vpop.f32.mrf.mxu0
    %v368 = vadd.f32 0.0, %v367
    %v369 = vpop.f32.mrf.mxu0
    %370 = vmatprep.mubr.f32.mxu0 0.0
    %371 = vmatmul.mubr.f32.gmra.mxu0 %v98
    %v372 = vpop.f32.mrf.mxu0
    %v373 = vadd.f32 0.0, %v372
    %v374 = vpop.f32.mrf.mxu0
    %375 = vmatprep.mubr.f32.mxu0 0.0
    %376 = vmatmul.mubr.f32.gmra.mxu0 %v101
    %v377 = vpop.f32.mrf.mxu0
    %v378 = vadd.f32 0.0, %v377
    %v379 = vpop.f32.mrf.mxu0
    %380 = vmatprep.mubr.f32.mxu0 0.0
    %381 = vmatmul.mubr.f32.gmra.mxu0 %v104
    %v382 = vpop.f32.mrf.mxu0
    %v383 = vadd.f32 0.0, %v382
    %v384 = vpop.f32.mrf.mxu0
    %385 = vmatprep.mubr.f32.mxu0 0.0
    %386 = vmatmul.mubr.f32.gmra.mxu0 %v107
    %v387 = vpop.f32.mrf.mxu0
    %v388 = vadd.f32 0.0, %v387
    %v389 = vpop.f32.mrf.mxu0
    %390 = vmatprep.mubr.f32.mxu0 0.0
    %391 = vmatmul.mubr.f32.gmra.mxu0 %v110
    %v392 = vpop.f32.mrf.mxu0
    %v393 = vadd.f32 0.0, %v392
    %v394 = vpop.f32.mrf.mxu0
    %395 = vmatprep.mubr.f32.mxu0 0.0
    %396 = vmatmul.mubr.f32.gmra.mxu0 %v113
    %v397 = vpop.f32.mrf.mxu0
    %v398 = vadd.f32 0.0, %v397
    %v399 = vpop.f32.mrf.mxu0
    %400 = vmatprep.mubr.f32.mxu0 0.0
    %401 = vmatmul.mubr.f32.gmra.mxu0 %v116
    %v402 = vpop.f32.mrf.mxu0
    %v403 = vadd.f32 0.0, %v402
    %v404 = vpop.f32.mrf.mxu0
    %405 = vmatprep.mubr.f32.mxu0 0.0
    %406 = vmatmul.mubr.f32.gmra.mxu0 %v119
    %v407 = vpop.f32.mrf.mxu0
    %v408 = vadd.f32 0.0, %v407
    %v409 = vpop.f32.mrf.mxu0
    %410 = vmatprep.mubr.f32.mxu0 0.0
    %411 = vmatmul.mubr.f32.gmra.mxu0 %v122
    %v412 = vpop.f32.mrf.mxu0
    %v413 = vadd.f32 0.0, %v412
    %v414 = vpop.f32.mrf.mxu0
    %415 = vdwg.mxu0
    %v416 = vmul.f32 %v191, %v338
    %v417 = vmul.f32 %v196, %v343
    %v418 = vmul.f32 %v201, %v348
    %v419 = vmul.f32 %v206, %v353
    %v420 = vmul.f32 %v211, %v358
    %v421 = vmul.f32 %v216, %v363
    %v422 = vmul.f32 %v221, %v368
    %v423 = vmul.f32 %v226, %v373
    %v424 = vmul.f32 %v231, %v378
    %v425 = vmul.f32 %v236, %v383
    %v426 = vmul.f32 %v241, %v388
    %v427 = vmul.f32 %v246, %v393
    %v428 = vmul.f32 %v251, %v398
    %v429 = vmul.f32 %v256, %v403
    %v430 = vmul.f32 %v261, %v408
    %v431 = vmul.f32 %v266, %v413
    %vm432 = vcmask 261120
    %433 = vst.msk [vmem:[%s2] sm:$0xff] %vm432, %v416
    %434 = vst.msk [vmem:[%s2 + $0x8] sm:$0xff] %vm432, %v417
    %435 = vst.msk [vmem:[%s2 + $0x10] sm:$0xff] %vm432, %v418
    %436 = vst.msk [vmem:[%s2 + $0x18] sm:$0xff] %vm432, %v419
    %437 = vst.msk [vmem:[%s2 + $0x20] sm:$0xff] %vm432, %v420
    %438 = vst.msk [vmem:[%s2 + $0x28] sm:$0xff] %vm432, %v421
    %439 = vst.msk [vmem:[%s2 + $0x30] sm:$0xff] %vm432, %v422
    %440 = vst.msk [vmem:[%s2 + $0x38] sm:$0xff] %vm432, %v423
    %441 = vst.msk [vmem:[%s2 + $0x40] sm:$0xff] %vm432, %v424
    %442 = vst.msk [vmem:[%s2 + $0x48] sm:$0xff] %vm432, %v425
    %443 = vst.msk [vmem:[%s2 + $0x50] sm:$0xff] %vm432, %v426
    %444 = vst.msk [vmem:[%s2 + $0x58] sm:$0xff] %vm432, %v427
    %445 = vst.msk [vmem:[%s2 + $0x60] sm:$0xff] %vm432, %v428
    %446 = vst.msk [vmem:[%s2 + $0x68] sm:$0xff] %vm432, %v429
    %447 = vst.msk [vmem:[%s2 + $0x70] sm:$0xff] %vm432, %v430
    %448 = vst.msk [vmem:[%s2 + $0x78] sm:$0xff] %vm432, %v431
    // Predicated region
    $region18: #{tpu_custom_call.1} parent=1 // pred_check
      _
    $region19: #{tpu_custom_call.1} parent=1 // pred_check_branch
      %450 = sbr.rel (0) target = $region21
    $region20: #{tpu_custom_call.1} parent=1 // pred_region
      _
    $region21: #{tpu_custom_call.1} parent=1 // pred_fallthru
      _
    // Predicated region
    $region22: #{tpu_custom_call.1} parent=1 // pred_check
      _
    $region23: #{tpu_custom_call.1} parent=1 // pred_check_branch
      %452 = sbr.rel (0) target = $region25
    $region24: #{tpu_custom_call.1} parent=1 // pred_region
      _
    $region25: #{tpu_custom_call.1} parent=1 // pred_fallthru
      _
    %453 = vsyncpa [#allocation3], 1
    %454 = vsyncpa [#allocation5], 1

</llo_original>
